<compile_context>
chip_gen: v7x
topology: tpu7x:2x2x1
jax: 0.10.0
libtpu: 0.0.40
codegen_flags: <defaults>
</compile_context>

<pallas_src>
import jax
import jax.numpy as jnp
from jax.experimental import pallas as pl
from jax.experimental.pallas import tpu as pltpu


def _round_up(x, m):
    return ((x + m - 1) // m) * m


def _vmem_capacity_bytes():
    """Physical VMEM per TensorCore; conservative 64 MiB fallback (v7x-sized)."""
    try:
        info = pltpu.get_tpu_info()
        cap = int(getattr(info, "vmem_capacity_bytes", 0) or 0)
        if cap > 0:
            return cap
    except Exception:
        pass
    return 64 * 1024 * 1024


def _vmem_budget_bytes(cap):
    # v7x-class (64 MiB/TC): stay well under physical.  v5e/v6e (128 MiB): ~110 MiB.
    if cap <= 72 * 1024 * 1024:
        return 48 * 1024 * 1024
    return 110 * 1024 * 1024


def _choose_tn_ff(d_ff, d_model_p, itemsize, budget, max_tn_ff=None):
    """Largest 128-multiple divisor of round_up(d_ff,128) whose double-buffered
    w1+w2 blocks use <= ~35% of the VMEM budget (zero d_ff over-padding)."""
    d_ff_128 = _round_up(d_ff, 128)
    m = d_ff_128 // 128
    max_tn = int(budget * 0.35) // max(1, 4 * d_model_p * itemsize)
    max_tn = (max_tn // 128) * 128
    max_tn = min(max_tn, 2048, d_ff_128)
    if max_tn_ff is not None:
        max_tn = min(max_tn, max(128, (int(max_tn_ff) // 128) * 128))
    max_tn = max(128, max_tn)
    best = 128
    for d in range(1, m + 1):
        if m % d == 0 and 128 * d <= max_tn:
            best = 128 * d
    return best, d_ff_128


def _per_step_vmem(tm, tn_ff, d_model_p, itemsize, nk):
    w = 2 * 2 * d_model_p * tn_ff * itemsize      # double-buffered w1 + w2 blocks
    xo = 2 * 2 * tm * d_model_p * itemsize        # double-buffered x tile + out tile
    bias = 2 * (tn_ff + d_model_p) * 4            # f32 b1 slice + b2 (double-buffered)
    acc = tm * d_model_p * 4 if nk > 1 else 0     # f32 accumulator scratch
    h = tm * tn_ff * (4 + itemsize)               # f32 fc1 activation + its bf16 cast
    return w + xo + bias + acc + h


def _choose_tm(n_tok, tn_ff, d_model_p, itemsize, nk, budget, sublane, two_core_hint):
    candidates = [1024, 512, 256, 128, 64, 32, 16, 8]
    tm = sublane
    for c in candidates:
        if c < sublane:
            continue
        if _per_step_vmem(c, tn_ff, d_model_p, itemsize, nk) <= int(budget * 0.85):
            tm = c
            break
    # v7x-class chips have 2 TensorCores: make sure the 'parallel' token axis
    # yields at least 2 tiles so both cores get work.
    if two_core_hint and n_tok > sublane:
        while tm > sublane and -(-n_tok // tm) < 2:
            tm //= 2
        tm = max(sublane, _round_up(tm, sublane))
    return tm


# ----------------------------- kernels --------------------------------------


def _ffn_kernel_single(x_ref, w1_ref, b1_ref, w2_ref, b2_ref, o_ref):
    # Single reduction step: no accumulator scratch, write output directly.
    h = jnp.dot(x_ref[...], w1_ref[0], preferred_element_type=jnp.float32)
    h = jnp.maximum(h + b1_ref[...], 0.0)
    out = jnp.dot(h.astype(w2_ref.dtype), w2_ref[...],
                  preferred_element_type=jnp.float32)
    o_ref[...] = (out + b2_ref[...]).astype(o_ref.dtype)


def _ffn_kernel_acc(x_ref, w1_ref, b1_ref, w2_ref, b2_ref, o_ref, acc_ref):
    # x_ref:  (tm, d_model_p)           token tile (constant across k)
    # w1_ref: (1, d_model_p, tn_ff)     pre-blocked fc1 weight slab (contiguous)
    # b1_ref: (1, tn_ff)                fc1 bias slice (f32)
    # w2_ref: (tn_ff, d_model_p)        fc2 weight row-block
    # b2_ref: (1, d_model_p)            fc2 bias (f32, applied once on finalize)
    # o_ref:  (tm, d_model_p)           output tile (resident across k)
    # acc_ref: VMEM (tm, d_model_p)     f32 accumulator
    k = pl.program_id(1)

    h = jnp.dot(x_ref[...], w1_ref[0], preferred_element_type=jnp.float32)
    h = jnp.maximum(h + b1_ref[...], 0.0)
    part = jnp.dot(h.astype(w2_ref.dtype), w2_ref[...],
                   preferred_element_type=jnp.float32)

    @pl.when(k == 0)
    def _():
        acc_ref[...] = part            # direct store: no zero-fill + add on k==0

    @pl.when(k > 0)
    def _():
        acc_ref[...] += part

    @pl.when(k == pl.num_programs(1) - 1)
    def _():
        o_ref[...] = (acc_ref[...] + b2_ref[...]).astype(o_ref.dtype)


# ----------------------------- wrappers --------------------------------------


def prepare_ffn_params(w1, b1, w2, b2, *, compute_dtype=jnp.bfloat16,
                       max_tn_ff=None):
    """One-time weight prep: cast, pad, and pre-block.  Hoisted out of the call path."""
    d_model, d_ff = w1.shape
    assert w2.shape == (d_ff, d_model), (w1.shape, w2.shape)
    work_dtype = jnp.dtype(compute_dtype) if compute_dtype is not None else jnp.dtype(w1.dtype)
    itemsize = work_dtype.itemsize

    cap = _vmem_capacity_bytes()
    budget = _vmem_budget_bytes(cap)

    d_model_p = _round_up(d_model, 128)
    tn_ff, d_ff_p = _choose_tn_ff(d_ff, d_model_p, itemsize, budget, max_tn_ff)
    nk = d_ff_p // tn_ff

    w1_p = jnp.pad(w1.astype(work_dtype),
                   ((0, d_model_p - d_model), (0, d_ff_p - d_ff)))
    # Pre-block so each (d_model_p, tn_ff) slice is contiguous in HBM.
    w1_blk = w1_p.reshape(d_model_p, nk, tn_ff).transpose(1, 0, 2)
    w2_p = jnp.pad(w2.astype(work_dtype),
                   ((0, d_ff_p - d_ff), (0, d_model_p - d_model)))
    b1_p = jnp.pad(b1.astype(jnp.float32), (0, d_ff_p - d_ff)).reshape(1, d_ff_p)
    b2_p = jnp.pad(b2.astype(jnp.float32), (0, d_model_p - d_model)).reshape(1, d_model_p)

    return dict(w1=w1_blk, b1=b1_p, w2=w2_p, b2=b2_p,
                d_model=d_model, d_ff=d_ff,
                d_model_p=d_model_p, d_ff_p=d_ff_p,
                tn_ff=tn_ff, nk=nk, work_dtype=work_dtype)


def feed_forward(x, params, *, tm=None):
    """x: (..., d_model). params: output of prepare_ffn_params. Returns x.shape."""
    p = params
    d_model = p["d_model"]
    assert x.shape[-1] == d_model, (x.shape, d_model)
    orig_shape, orig_dtype = x.shape, x.dtype

    work_dtype = p["work_dtype"]
    itemsize = jnp.dtype(work_dtype).itemsize
    d_model_p, d_ff_p = p["d_model_p"], p["d_ff_p"]
    tn_ff, nk = p["tn_ff"], p["nk"]

    x2d = x.reshape(-1, d_model).astype(work_dtype)
    n_tok = x2d.shape[0]
    sublane = 16 if work_dtype == jnp.bfloat16 else 8

    cap = _vmem_capacity_bytes()
    budget = _vmem_budget_bytes(cap)
    two_core_hint = cap <= 72 * 1024 * 1024   # v7x-class heuristic (2 TCs / 64 MiB VMEM)

    if tm is None:
        tm = _choose_tm(n_tok, tn_ff, d_model_p, itemsize, nk, budget,
                        sublane, two_core_hint)
    tm = max(sublane, _round_up(min(int(tm), _round_up(n_tok, sublane)), sublane))
    n_tok_p = _round_up(n_tok, tm)
    n_i = n_tok_p // tm

    # Zero padding keeps the math exact: padded d_ff lanes see zero weight and
    # zero bias -> ReLU(0) = 0 -> contribute nothing to fc2; padded d_model
    # columns are sliced off at the end.
    x_p = jnp.pad(x2d, ((0, n_tok_p - n_tok), (0, d_model_p - d_model)))

    est = _per_step_vmem(tm, tn_ff, d_model_p, itemsize, nk)
    vmem_limit = int(min(max(est * 3 // 2, 32 * 1024 * 1024), budget))
    vmem_limit = int(min(max(vmem_limit, est + (4 << 20)), budget))

    flops = 4 * n_tok_p * d_model_p * d_ff_p       # two matmuls, 2 flops per MAC
    bytes_accessed = (2 * n_tok_p * d_model_p * itemsize
                      + n_i * 2 * d_model_p * d_ff_p * itemsize
                      + (d_ff_p + d_model_p) * 4)
    cost = pl.CostEstimate(flops=int(flops), transcendentals=0,
                           bytes_accessed=int(bytes_accessed))

    if nk > 1:
        kernel = _ffn_kernel_acc
        scratch = [pltpu.VMEM((tm, d_model_p), jnp.float32)]
    else:
        kernel = _ffn_kernel_single
        scratch = []

    out = pl.pallas_call(
        kernel,
        out_shape=jax.ShapeDtypeStruct((n_tok_p, d_model_p), work_dtype),
        grid_spec=pltpu.PrefetchScalarGridSpec(
            num_scalar_prefetch=0,
            grid=(n_i, nk),
            in_specs=[
                pl.BlockSpec((tm, d_model_p), lambda i, k: (i, 0)),        # x tile
                pl.BlockSpec((1, d_model_p, tn_ff), lambda i, k: (k, 0, 0)),  # w1 slab
                pl.BlockSpec((1, tn_ff), lambda i, k: (0, k)),             # b1 slice
                pl.BlockSpec((tn_ff, d_model_p), lambda i, k: (k, 0)),     # w2 block
                pl.BlockSpec((1, d_model_p), lambda i, k: (0, 0)),         # b2
            ],
            out_specs=pl.BlockSpec((tm, d_model_p), lambda i, k: (i, 0)),
            scratch_shapes=scratch,
        ),
        compiler_params=pltpu.CompilerParams(
            dimension_semantics=("parallel", "arbitrary"),
            vmem_limit_bytes=vmem_limit,
        ),
        cost_estimate=cost,
    )(x_p, p["w1"], p["b1"], p["w2"], p["b2"])

    return out[:n_tok, :d_model].astype(orig_dtype).reshape(orig_shape)


def feed_forward_raw(x, w1, b1, w2, b2, *, compute_dtype=jnp.bfloat16, tm=None,
                     max_tn_ff=None):
    """Convenience wrapper matching the original API (prepares weights per call)."""
    params = prepare_ffn_params(w1, b1, w2, b2, compute_dtype=compute_dtype,
                                max_tn_ff=max_tn_ff)
    return feed_forward(x, params, tm=tm)


def _ref_ffn(x, w1, b1, w2, b2, compute_dtype=None):
    xd, w1d, w2d = x, w1, w2
    if compute_dtype is not None:
        xd = x.astype(compute_dtype)
        w1d = w1.astype(compute_dtype)
        w2d = w2.astype(compute_dtype)
    h = jnp.maximum(jnp.dot(xd, w1d, preferred_element_type=jnp.float32)
                    + b1.astype(jnp.float32), 0.0)
    out = (jnp.dot(h.astype(w2d.dtype), w2d, preferred_element_type=jnp.float32)
           + b2.astype(jnp.float32))
    return out.astype(x.dtype)


if __name__ == "__main__":
    # Small config consistent with the module: d_model=32, d_ff=64, batch=2, seq=8.
    batch, seq, d_model, d_ff = 2, 8, 32, 64

    key = jax.random.PRNGKey(0)
    kx, k1, k2, k3, k4, kx2, k5, k6, k7, k8 = jax.random.split(key, 10)

    x = jax.random.normal(kx, (batch, seq, d_model), dtype=jnp.float32)
    s1 = 1.0 / jnp.sqrt(d_model)
    s2 = 1.0 / jnp.sqrt(d_ff)
    # Linear-like synthetic parameters stored as [in_features, out_features].
    w1 = jax.random.uniform(k1, (d_model, d_ff), jnp.float32, -s1, s1)
    b1 = jax.random.uniform(k2, (d_ff,), jnp.float32, -s1, s1)
    w2 = jax.random.uniform(k3, (d_ff, d_model), jnp.float32, -s2, s2)
    b2 = jax.random.uniform(k4, (d_model,), jnp.float32, -s2, s2)

    # 1) Default bf16 compute path (single-k fast path at this size).
    params_bf16 = prepare_ffn_params(w1, b1, w2, b2)
    out_bf16 = jax.block_until_ready(feed_forward(x, params_bf16))
    assert out_bf16.shape == x.shape, (out_bf16.shape, x.shape)
    ref_bf16 = _ref_ffn(x, w1, b1, w2, b2, compute_dtype=jnp.bfloat16)
    assert jnp.allclose(out_bf16, ref_bf16, atol=2e-2, rtol=2e-2), "bf16 mismatch vs bf16 ref"
    ref_f32 = _ref_ffn(x, w1, b1, w2, b2)
    assert jnp.allclose(out_bf16, ref_f32, atol=1e-1, rtol=1e-1), "bf16 mismatch vs f32 ref"

    # 2) f32 compute path, tight tolerance.
    params_f32 = prepare_ffn_params(w1, b1, w2, b2, compute_dtype=jnp.float32)
    out_f32 = jax.block_until_ready(feed_forward(x, params_f32))
    assert jnp.allclose(out_f32, ref_f32, atol=1e-5, rtol=1e-5), "f32 mismatch vs f32 ref"

    # 3) Multi-step reduction path (forces nk > 1 via max_tn_ff) to exercise the
    #    accumulator kernel and the token-tile split.
    d_model2, d_ff2 = 256, 1024
    x2 = jax.random.normal(kx2, (4, 16, d_model2), dtype=jnp.float32)
    t1 = 1.0 / jnp.sqrt(d_model2)
    t2 = 1.0 / jnp.sqrt(d_ff2)
    w1b = jax.random.uniform(k5, (d_model2, d_ff2), jnp.float32, -t1, t1)
    b1b = jax.random.uniform(k6, (d_ff2,), jnp.float32, -t1, t1)
    w2b = jax.random.uniform(k7, (d_ff2, d_model2), jnp.float32, -t2, t2)
    b2b = jax.random.uniform(k8, (d_model2,), jnp.float32, -t2, t2)
    params_multi = prepare_ffn_params(w1b, b1b, w2b, b2b,
                                      compute_dtype=jnp.bfloat16, max_tn_ff=256)
    assert params_multi["nk"] > 1
    out_multi = jax.block_until_ready(feed_forward(x2, params_multi))
    ref_multi = _ref_ffn(x2, w1b, b1b, w2b, b2b, compute_dtype=jnp.bfloat16)
    assert out_multi.shape == x2.shape
    assert jnp.allclose(out_multi, ref_multi, atol=2e-2, rtol=2e-2), "multi-step mismatch"

    print("KERNEL_OK")
</pallas_src>

<mosaic_0001>
module attributes {stable_mosaic.version = 11 : i64} {
  func.func @_ffn_kernel_single(%arg0: i32, %arg1: i32, %arg2: memref<16x128xbf16, #tpu.memory_space<vmem>>, %arg3: memref<1x128x128xbf16, #tpu.memory_space<vmem>>, %arg4: memref<1x128xf32, #tpu.memory_space<vmem>>, %arg5: memref<128x128xbf16, #tpu.memory_space<vmem>>, %arg6: memref<1x128xf32, #tpu.memory_space<vmem>>, %arg7: memref<16x128xbf16, #tpu.memory_space<vmem>>) attributes {dimension_semantics = [#tpu.dimension_semantics<parallel>, #tpu.dimension_semantics<arbitrary>], iteration_bounds = array<i64: 1, 1>, scalar_prefetch = 0 : i64, scratch_operands = 0 : i64, tpu.core_type = #tpu.core_type<tc>, window_params = [{transform_indices = @transform_0, window_bounds = array<i64: 16, 128>}, {transform_indices = @transform_1, window_bounds = array<i64: 1, 128, 128>}, {transform_indices = @transform_2, window_bounds = array<i64: 1, 128>}, {transform_indices = @transform_3, window_bounds = array<i64: 128, 128>}, {pipeline_mode = #tpu.pipeline_mode<synchronous>, transform_indices = @transform_4, window_bounds = array<i64: 1, 128>}, {transform_indices = @transform_5, window_bounds = array<i64: 16, 128>}]} {
    %c0 = arith.constant 0 : index
    %c0_0 = arith.constant 0 : index
    %0 = vector.load %arg2[%c0, %c0_0] : memref<16x128xbf16, #tpu.memory_space<vmem>>, vector<16x128xbf16>
    %c0_1 = arith.constant 0 : index
    %c0_2 = arith.constant 0 : index
    %c0_3 = arith.constant 0 : index
    %1 = vector.load %arg3[%c0_1, %c0_2, %c0_3] : memref<1x128x128xbf16, #tpu.memory_space<vmem>>, vector<1x128x128xbf16>
    %2 = vector.shape_cast %1 : vector<1x128x128xbf16> to vector<128x128xbf16>
    %cst = arith.constant dense<0.000000e+00> : vector<16x128xf32>
    %3 = tpu.matmul %0, %2, %cst {dimension_numbers = #tpu.dot_dimension_numbers<[1], [0], [0], [1], [0, 0, 1, 1], [], []>} : vector<16x128xbf16>, vector<128x128xbf16>, vector<16x128xf32> -> vector<16x128xf32>
    %c0_4 = arith.constant 0 : index
    %c0_5 = arith.constant 0 : index
    %4 = vector.load %arg4[%c0_4, %c0_5] : memref<1x128xf32, #tpu.memory_space<vmem>>, vector<1x128xf32>
    %5 = vector.broadcast %4 : vector<1x128xf32> to vector<16x128xf32>
    %6 = arith.addf %3, %5 : vector<16x128xf32>
    %cst_6 = arith.constant 0.000000e+00 : f32
    %7 = vector.broadcast %cst_6 : f32 to vector<16x128xf32>
    %8 = arith.maximumf %6, %7 : vector<16x128xf32>
    %9 = arith.truncf %8 : vector<16x128xf32> to vector<16x128xbf16>
    %c0_7 = arith.constant 0 : index
    %c0_8 = arith.constant 0 : index
    %10 = vector.load %arg5[%c0_7, %c0_8] : memref<128x128xbf16, #tpu.memory_space<vmem>>, vector<128x128xbf16>
    %cst_9 = arith.constant dense<0.000000e+00> : vector<16x128xf32>
    %11 = tpu.matmul %9, %10, %cst_9 {dimension_numbers = #tpu.dot_dimension_numbers<[1], [0], [0], [1], [0, 0, 1, 1], [], []>} : vector<16x128xbf16>, vector<128x128xbf16>, vector<16x128xf32> -> vector<16x128xf32>
    %c0_10 = arith.constant 0 : index
    %c0_11 = arith.constant 0 : index
    %12 = vector.load %arg6[%c0_10, %c0_11] : memref<1x128xf32, #tpu.memory_space<vmem>>, vector<1x128xf32>
    %13 = vector.broadcast %12 : vector<1x128xf32> to vector<16x128xf32>
    %14 = arith.addf %11, %13 : vector<16x128xf32>
    %15 = arith.truncf %14 : vector<16x128xf32> to vector<16x128xbf16>
    %c0_12 = arith.constant 0 : index
    %c0_13 = arith.constant 0 : index
    %16 = vector.load %arg7[%c0_12, %c0_13] : memref<16x128xbf16, #tpu.memory_space<vmem>>, vector<16x128xbf16>
    tpu.vector_store %arg7[%c0_12, %c0_13], %15 {strides = array<i32>} : memref<16x128xbf16, #tpu.memory_space<vmem>>, vector<16x128xbf16>,
    return
  }
  func.func @transform_0(%arg0: i32, %arg1: i32) -> (i32, i32) {
    %c0_i32 = arith.constant 0 : i32
    %c0_i32_0 = arith.constant 0 : i32
    return %arg0, %c0_i32 : i32, i32
  }
  func.func @transform_1(%arg0: i32, %arg1: i32) -> (i32, i32, i32) {
    %c0_i32 = arith.constant 0 : i32
    %c0_i32_0 = arith.constant 0 : i32
    %c0_i32_1 = arith.constant 0 : i32
    return %arg1, %c0_i32, %c0_i32_0 : i32, i32, i32
  }
  func.func @transform_2(%arg0: i32, %arg1: i32) -> (i32, i32) {
    %c0_i32 = arith.constant 0 : i32
    %c0_i32_0 = arith.constant 0 : i32
    return %c0_i32, %arg1 : i32, i32
  }
  func.func @transform_3(%arg0: i32, %arg1: i32) -> (i32, i32) {
    %c0_i32 = arith.constant 0 : i32
    %c0_i32_0 = arith.constant 0 : i32
    return %arg1, %c0_i32 : i32, i32
  }
  func.func @transform_4(%arg0: i32, %arg1: i32) -> (i32, i32) {
    %c0_i32 = arith.constant 0 : i32
    %c0_i32_0 = arith.constant 0 : i32
    %c0_i32_1 = arith.constant 0 : i32
    return %c0_i32, %c0_i32_0 : i32, i32
  }
  func.func @transform_5(%arg0: i32, %arg1: i32) -> (i32, i32) {
    %c0_i32 = arith.constant 0 : i32
    %c0_i32_0 = arith.constant 0 : i32
    return %arg0, %c0_i32 : i32, i32
  }
}

</mosaic_0001>

<llo_original>
// kernel: tpu_custom_call.1
$region0: #{tpu_custom_call.1}
  #allocation0 [shape = 'u32[]', space=smem, size = 0x4, offset = 0x4, fixed_abs, tag = 'smem constant byte address 0x4 - core index']
  #allocation1 [shape = 'u32[144,128]{1,0:T(1,128)}', space=vmem, size = 0x12000, scoped, tag = 'internal scratch']
  %s0 = inlined_call_operand.hbm [shape: bf16[16,128], index: 0, kind: input, shape index: {}]
  %s1 = inlined_call_operand.hbm [shape: bf16[1,128,128], index: 1, kind: input, shape index: {}]
  %s2 = inlined_call_operand.vmem [shape: f32[1,128], index: 2, kind: input, shape index: {}]
  %s3 = inlined_call_operand.hbm [shape: bf16[128,128], index: 3, kind: input, shape index: {}]
  %s4 = inlined_call_operand.vmem [shape: f32[1,128], index: 4, kind: input, shape index: {}]
  %s5 = inlined_call_operand.hbm [shape: bf16[16,128], index: 5, kind: output, shape index: {}]
  %s6 = sld [smem:[#allocation0]]
  $region42: #{tpu_custom_call.1} parent=0
    _
  %s8 = ssub.s32 1, %s6
  %s9 = scalar_select 0, %s8, %s6
  $region1: #{tpu_custom_call.1} parent=0
    #allocation2 [shape = 'u8[4096]{0}', space=vmem, size = 0x1000, scoped, tag = 'input window, operand 0, single buffered']
    #allocation3 [shape = 's32[1]{0}', space=sflag, size = 0x4, scoped, tag = 'scoped memory for tpu_custom_call.1']
    #allocation4 [shape = 's32[1]{0}', space=sflag, size = 0x4, scoped, tag = 'scoped memory for tpu_custom_call.1']
    #allocation5 [shape = 'u8[32768]{0}', space=vmem, size = 0x8000, scoped, tag = 'input window, operand 1, single buffered']
    #allocation6 [shape = 's32[1]{0}', space=sflag, size = 0x4, scoped, tag = 'scoped memory for tpu_custom_call.1']
    #allocation7 [shape = 'u8[32768]{0}', space=vmem, size = 0x8000, scoped, tag = 'input window, operand 3, single buffered']
    #allocation8 [shape = 'u8[4096]{0}', space=vmem, size = 0x1000, scoped, tag = 'output window, operand 0, single buffered']
    %10 = vsyncpa [#allocation3], 0
    %11 = vsyncpa [#allocation6], 0
    %12 = vsyncpa [#allocation4], 0
    // Predicated region
    $region2: #{tpu_custom_call.1} parent=1 // pred_check
      _
    $region3: #{tpu_custom_call.1} parent=1 // pred_check_branch
      %14 = sbr.rel (0) target = $region5
    $region4: #{tpu_custom_call.1} parent=1 // pred_region
      %s16 = ssub.s32 128, 128
      %17 = vsyncadd [#allocation3], %s16
      %s18 = sshll.u32 [#allocation2], 4
      %s19 = int_to_ptr.vmem [resolvable:$true] %s18
      %24 = dma.hbm_to_vmem [thread:$0]  %s0, 128, %s19, [#allocation3], 64, 64, 4
    $region5: #{tpu_custom_call.1} parent=1 // pred_fallthru
      _
    // Predicated region
    $region6: #{tpu_custom_call.1} parent=1 // pred_check
      _
    $region7: #{tpu_custom_call.1} parent=1 // pred_check_branch
      %26 = sbr.rel (0) target = $region9
    $region8: #{tpu_custom_call.1} parent=1 // pred_region
      %s28 = ssub.s32 1024, 1024
      %29 = vsyncadd [#allocation6], %s28
      %s30 = sshll.u32 [#allocation5], 4
      %s31 = int_to_ptr.vmem [resolvable:$true] %s30
      %36 = dma.hbm_to_vmem [thread:$0]  %s1, 1024, %s31, [#allocation6], 64, 64, 4
    $region9: #{tpu_custom_call.1} parent=1 // pred_fallthru
      _
    // Predicated region
    $region10: #{tpu_custom_call.1} parent=1 // pred_check
      _
    $region11: #{tpu_custom_call.1} parent=1 // pred_check_branch
      %38 = sbr.rel (0) target = $region13
    $region12: #{tpu_custom_call.1} parent=1 // pred_region
      _
    $region13: #{tpu_custom_call.1} parent=1 // pred_fallthru
      _
    // Predicated region
    $region14: #{tpu_custom_call.1} parent=1 // pred_check
      _
    $region15: #{tpu_custom_call.1} parent=1 // pred_check_branch
      %40 = sbr.rel (0) target = $region17
    $region16: #{tpu_custom_call.1} parent=1 // pred_region
      %s42 = ssub.s32 1024, 1024
      %43 = vsyncadd [#allocation6], %s42
      %s44 = sshll.u32 [#allocation7], 4
      %s45 = int_to_ptr.vmem [resolvable:$true] %s44
      %50 = dma.hbm_to_vmem [thread:$0]  %s3, 1024, %s45, [#allocation6], 64, 64, 4
    $region17: #{tpu_custom_call.1} parent=1 // pred_fallthru
      _
    // Predicated region
    $region18: #{tpu_custom_call.1} parent=1 // pred_check
      _
    $region19: #{tpu_custom_call.1} parent=1 // pred_check_branch
      %52 = sbr.rel (0) target = $region21
    $region20: #{tpu_custom_call.1} parent=1 // pred_region
      _
    $region21: #{tpu_custom_call.1} parent=1 // pred_fallthru
      _
    // Predicated region
    $region22: #{tpu_custom_call.1} parent=1 // pred_check
      _
    $region23: #{tpu_custom_call.1} parent=1 // pred_check_branch
      %54 = sbr.rel (0) target = $region25
    $region24: #{tpu_custom_call.1} parent=1 // pred_region
      %55 = dma.done [#allocation3], 128
    $region25: #{tpu_custom_call.1} parent=1 // pred_fallthru
      _
    // Predicated region
    $region26: #{tpu_custom_call.1} parent=1 // pred_check
      _
    $region27: #{tpu_custom_call.1} parent=1 // pred_check_branch
      %57 = sbr.rel (0) target = $region29
    $region28: #{tpu_custom_call.1} parent=1 // pred_region
      %58 = dma.done [#allocation6], 1024
    $region29: #{tpu_custom_call.1} parent=1 // pred_fallthru
      _
    // Predicated region
    $region30: #{tpu_custom_call.1} parent=1 // pred_check
      _
    $region31: #{tpu_custom_call.1} parent=1 // pred_check_branch
      %60 = sbr.rel (0) target = $region33
    $region32: #{tpu_custom_call.1} parent=1 // pred_region
      %61 = dma.done [#allocation6], 1024
    $region33: #{tpu_custom_call.1} parent=1 // pred_fallthru
      _
    %v63 = vld [vmem:[#allocation2] sm:$0xf]
    %v64 = vld [vmem:[#allocation2 + $0x4] sm:$0xf]
    %v65 = vld [vmem:[#allocation5] sm:$0xf]
    %v66 = vld [vmem:[#allocation5 + $0x4] sm:$0xf]
    %v67 = vld [vmem:[#allocation5 + $0x8] sm:$0xf]
    %v68 = vld [vmem:[#allocation5 + $0xc] sm:$0xf]
    %v69 = vld [vmem:[#allocation5 + $0x10] sm:$0xf]
    %v70 = vld [vmem:[#allocation5 + $0x14] sm:$0xf]
    %v71 = vld [vmem:[#allocation5 + $0x18] sm:$0xf]
    %v72 = vld [vmem:[#allocation5 + $0x1c] sm:$0xf]
    %v73 = vld [vmem:[#allocation5 + $0x20] sm:$0xf]
    %v74 = vld [vmem:[#allocation5 + $0x24] sm:$0xf]
    %v75 = vld [vmem:[#allocation5 + $0x28] sm:$0xf]
    %v76 = vld [vmem:[#allocation5 + $0x2c] sm:$0xf]
    %v77 = vld [vmem:[#allocation5 + $0x30] sm:$0xf]
    %v78 = vld [vmem:[#allocation5 + $0x34] sm:$0xf]
    %v79 = vld [vmem:[#allocation5 + $0x38] sm:$0xf]
    %v80 = vld [vmem:[#allocation5 + $0x3c] sm:$0xf]
    %v81 = vld [vmem:[%s2] sm:$0x1]
    %v83 = vlaneseq
    %v84 = vshrl.u32 %v83, 7
    %v85 = vsub.s32 0, %v84
    %v86 = vrot.slane %v81, %v85
    %v90 = vunpack.c.l.b16 %v63
    %v91 = vunpack.c.l.b16 %v64
    %v92 = vpack.c.b16 %v91, %v90
    %v110 = vunpack.c.l.b16 %v65
    %v111 = vunpack.c.l.b16 %v66
    %v112 = vunpack.c.l.b16 %v67
    %v113 = vunpack.c.l.b16 %v68
    %v114 = vunpack.c.l.b16 %v69
    %v115 = vunpack.c.l.b16 %v70
    %v116 = vunpack.c.l.b16 %v71
    %v117 = vunpack.c.l.b16 %v72
    %v118 = vunpack.c.l.b16 %v73
    %v119 = vunpack.c.l.b16 %v74
    %v120 = vunpack.c.l.b16 %v75
    %v121 = vunpack.c.l.b16 %v76
    %v122 = vunpack.c.l.b16 %v77
    %v123 = vunpack.c.l.b16 %v78
    %v124 = vunpack.c.l.b16 %v79
    %v125 = vunpack.c.l.b16 %v80
    %v126 = vpack.c.b16 %v111, %v110
    %v127 = vpack.c.b16 %v113, %v112
    %v128 = vpack.c.b16 %v115, %v114
    %v129 = vpack.c.b16 %v117, %v116
    %v130 = vpack.c.b16 %v119, %v118
    %v131 = vpack.c.b16 %v121, %v120
    %v132 = vpack.c.b16 %v123, %v122
    %v133 = vpack.c.b16 %v125, %v124
    %142 = vmatprep.subr.bf16.mxu0 0
    %143 = vmatpush1.bf16.msra.mxu0 %v126
    %144 = vmatprep.subr.bf16.mxu0 0
    %145 = vmatpush1.bf16.msra.mxu0 %v127
    %146 = vmatprep.subr.bf16.mxu0 0
    %147 = vmatpush1.bf16.msra.mxu0 %v128
    %148 = vmatprep.subr.bf16.mxu0 0
    %149 = vmatpush1.bf16.msra.mxu0 %v129
    %150 = vmatprep.subr.bf16.mxu0 0
    %151 = vmatpush1.bf16.msra.mxu0 %v130
    %152 = vmatprep.subr.bf16.mxu0 0
    %153 = vmatpush1.bf16.msra.mxu0 %v131
    %154 = vmatprep.subr.bf16.mxu0 0
    %155 = vmatpush1.bf16.msra.mxu0 %v132
    %156 = vmatprep.subr.bf16.mxu0 0
    %157 = vmatpush1.bf16.msra.mxu0 %v133
    %158 = vmatprep.subr.bf16.mxu0 0
    %159 = vmatpush1.bf16.msra.mxu0 0
    %160 = vmatprep.subr.bf16.mxu0 0
    %161 = vmatpush1.bf16.msra.mxu0 0
    %162 = vmatprep.subr.bf16.mxu0 0
    %163 = vmatpush1.bf16.msra.mxu0 0
    %164 = vmatprep.subr.bf16.mxu0 0
    %165 = vmatpush1.bf16.msra.mxu0 0
    %166 = vmatprep.subr.bf16.mxu0 0
    %167 = vmatpush1.bf16.msra.mxu0 0
    %168 = vmatprep.subr.bf16.mxu0 0
    %169 = vmatpush1.bf16.msra.mxu0 0
    %170 = vmatprep.subr.bf16.mxu0 0
    %171 = vmatpush1.bf16.msra.mxu0 0
    %172 = vmatprep.subr.bf16.mxu0 0
    %173 = vmatpush1.bf16.msra.mxu0 0
    %174 = vmatprep.mubr.bf16.mxu0 0
    %175 = vmatmul.mubr.bf16.gmra.mrb[0].mxu0 %v92
    %v176 = vpop.f32.mrb[0].mxu0
    %v177 = vadd.f32 %v86, %v176
    %v178 = vpop.f32.mrb[0].mxu0
    %v179 = vpop.f32.mrb[0].mxu0
    %v180 = vadd.f32 %v86, %v179
    %v181 = vpop.f32.mrb[0].mxu0
    %182 = vdwg.mxu0
    %v183 = vmax.f32 %v177, 0.0
    %v184 = vmax.f32 %v180, 0.0
    %v185 = vpack.c.bf16 %v184, %v183
    %v186 = vld [vmem:[#allocation7] sm:$0xf]
    %v187 = vld [vmem:[#allocation7 + $0x4] sm:$0xf]
    %v188 = vld [vmem:[#allocation7 + $0x8] sm:$0xf]
    %v189 = vld [vmem:[#allocation7 + $0xc] sm:$0xf]
    %v190 = vld [vmem:[#allocation7 + $0x10] sm:$0xf]
    %v191 = vld [vmem:[#allocation7 + $0x14] sm:$0xf]
    %v192 = vld [vmem:[#allocation7 + $0x18] sm:$0xf]
    %v193 = vld [vmem:[#allocation7 + $0x1c] sm:$0xf]
    %v194 = vld [vmem:[#allocation7 + $0x20] sm:$0xf]
    %v195 = vld [vmem:[#allocation7 + $0x24] sm:$0xf]
    %v196 = vld [vmem:[#allocation7 + $0x28] sm:$0xf]
    %v197 = vld [vmem:[#allocation7 + $0x2c] sm:$0xf]
    %v198 = vld [vmem:[#allocation7 + $0x30] sm:$0xf]
    %v199 = vld [vmem:[#allocation7 + $0x34] sm:$0xf]
    %v200 = vld [vmem:[#allocation7 + $0x38] sm:$0xf]
    %v201 = vld [vmem:[#allocation7 + $0x3c] sm:$0xf]
    %v202 = vld [vmem:[%s4] sm:$0x1]
    %v204 = vlaneseq
    %v205 = vshrl.u32 %v204, 7
    %v206 = vsub.s32 0, %v205
    %v207 = vrot.slane %v202, %v206
    %v225 = vunpack.c.l.b16 %v186
    %v226 = vunpack.c.l.b16 %v187
    %v227 = vunpack.c.l.b16 %v188
    %v228 = vunpack.c.l.b16 %v189
    %v229 = vunpack.c.l.b16 %v190
    %v230 = vunpack.c.l.b16 %v191
    %v231 = vunpack.c.l.b16 %v192
    %v232 = vunpack.c.l.b16 %v193
    %v233 = vunpack.c.l.b16 %v194
    %v234 = vunpack.c.l.b16 %v195
    %v235 = vunpack.c.l.b16 %v196
    %v236 = vunpack.c.l.b16 %v197
    %v237 = vunpack.c.l.b16 %v198
    %v238 = vunpack.c.l.b16 %v199
    %v239 = vunpack.c.l.b16 %v200
    %v240 = vunpack.c.l.b16 %v201
    %v241 = vpack.c.b16 %v226, %v225
    %v242 = vpack.c.b16 %v228, %v227
    %v243 = vpack.c.b16 %v230, %v229
    %v244 = vpack.c.b16 %v232, %v231
    %v245 = vpack.c.b16 %v234, %v233
    %v246 = vpack.c.b16 %v236, %v235
    %v247 = vpack.c.b16 %v238, %v237
    %v248 = vpack.c.b16 %v240, %v239
    %257 = vmatprep.subr.bf16.mxu0 0
    %258 = vmatpush1.bf16.msra.mxu0 %v241
    %259 = vmatprep.subr.bf16.mxu0 0
    %260 = vmatpush1.bf16.msra.mxu0 %v242
    %261 = vmatprep.subr.bf16.mxu0 0
    %262 = vmatpush1.bf16.msra.mxu0 %v243
    %263 = vmatprep.subr.bf16.mxu0 0
    %264 = vmatpush1.bf16.msra.mxu0 %v244
    %265 = vmatprep.subr.bf16.mxu0 0
    %266 = vmatpush1.bf16.msra.mxu0 %v245
    %267 = vmatprep.subr.bf16.mxu0 0
    %268 = vmatpush1.bf16.msra.mxu0 %v246
    %269 = vmatprep.subr.bf16.mxu0 0
    %270 = vmatpush1.bf16.msra.mxu0 %v247
    %271 = vmatprep.subr.bf16.mxu0 0
    %272 = vmatpush1.bf16.msra.mxu0 %v248
    %273 = vmatprep.subr.bf16.mxu0 0
    %274 = vmatpush1.bf16.msra.mxu0 0
    %275 = vmatprep.subr.bf16.mxu0 0
    %276 = vmatpush1.bf16.msra.mxu0 0
    %277 = vmatprep.subr.bf16.mxu0 0
    %278 = vmatpush1.bf16.msra.mxu0 0
    %279 = vmatprep.subr.bf16.mxu0 0
    %280 = vmatpush1.bf16.msra.mxu0 0
    %281 = vmatprep.subr.bf16.mxu0 0
    %282 = vmatpush1.bf16.msra.mxu0 0
    %283 = vmatprep.subr.bf16.mxu0 0
    %284 = vmatpush1.bf16.msra.mxu0 0
    %285 = vmatprep.subr.bf16.mxu0 0
    %286 = vmatpush1.bf16.msra.mxu0 0
    %287 = vmatprep.subr.bf16.mxu0 0
    %288 = vmatpush1.bf16.msra.mxu0 0
    %289 = vmatprep.mubr.bf16.mxu0 0
    %290 = vmatmul.mubr.bf16.gmra.mrb[0].mxu0 %v185
    %v291 = vpop.f32.mrb[0].mxu0
    %v292 = vadd.f32 %v207, %v291
    %v293 = vpop.f32.mrb[0].mxu0
    %v294 = vpop.f32.mrb[0].mxu0
    %v295 = vadd.f32 %v207, %v294
    %v296 = vpop.f32.mrb[0].mxu0
    %297 = vdwg.mxu0
    %v298 = vpack.c.bf16 %v295, %v292
    %v300 = vunpack.c.l.b16 %v298
    %v301 = vunpack.c.h.b16 %v298
    %v302 = vpack.c.b16 %v300, %v300
    %v303 = vpack.c.b16 %v301, %v301
    %306 = vst [vmem:[#allocation8] sm:$0xf] %v302
    %307 = vst [vmem:[#allocation8 + $0x4] sm:$0xf] %v303
    // Predicated region
    $region34: #{tpu_custom_call.1} parent=1 // pred_check
      _
    $region35: #{tpu_custom_call.1} parent=1 // pred_check_branch
      %309 = sbr.rel (0) target = $region37
    $region36: #{tpu_custom_call.1} parent=1 // pred_region
      %s311 = ssub.s32 128, 128
      %312 = vsyncadd [#allocation4], %s311
      %s313 = sshll.u32 [#allocation8], 4
      %s314 = int_to_ptr.vmem [resolvable:$true] %s313
      %319 = dma.vmem_to_hbm [thread:$0]  %s314, 128, %s5, [#allocation4], 64, 64, 4
    $region37: #{tpu_custom_call.1} parent=1 // pred_fallthru
      _
    // Predicated region
    $region38: #{tpu_custom_call.1} parent=1 // pred_check
      _
    $region39: #{tpu_custom_call.1} parent=1 // pred_check_branch
      %321 = sbr.rel (0) target = $region41
    $region40: #{tpu_custom_call.1} parent=1 // pred_region
      %322 = dma.done [#allocation4], 128
    $region41: #{tpu_custom_call.1} parent=1 // pred_fallthru
      _
    %323 = vsyncpa [#allocation3], 1
    %324 = vsyncpa [#allocation6], 1
    %325 = vsyncpa [#allocation4], 1

</llo_original>
